<compile_context>
chip_gen: v6e
topology: v6e:2x2x1
jax: 0.10.0
libtpu: 0.0.40
codegen_flags: <defaults>
</compile_context>

<pallas_src>
import jax
import jax.numpy as jnp
from jax.experimental import pallas as pl
from jax.experimental.pallas import tpu as pltpu

LATENT_DIM = 32                    # opt.latent_dim (synthetic choice)
H1, H2, OUT = 128, 256, 5 * 128    # 640
MAX_BATCH_TILE = 1024              # rows per grid step for large batches


def _round_up(x, m):
    return ((x + m - 1) // m) * m


def _leaky_relu(x, slope=0.02):
    return jnp.where(x > 0, x, slope * x)


def _choose_batch_tile(B, max_batch_tile):
    """Rows per grid step: 8-aligned, <= max_batch_tile, and >= 2 grid steps
    whenever the (padded) batch allows it so v7x's two TensorCores both run."""
    B8 = _round_up(B, 8)
    if B8 <= 8:
        return B8
    return min(max_batch_tile, _round_up((B8 + 1) // 2, 8))


def generator1_kernel(z_ref, w1_ref, b1_ref, w2_ref, b2_ref, w3_ref, b3_ref, o_ref):
    # z arrives f32; cast to bf16 in-kernel for the MXU (wrapper stays cast-free).
    z = z_ref[...].astype(jnp.bfloat16)

    # Layer 1: (bt, latent)bf16 @ (latent, 128)bf16 -> f32 acc; bias/LeakyReLU in f32.
    h = jnp.dot(z, w1_ref[...], preferred_element_type=jnp.float32)
    h = _leaky_relu(h + b1_ref[...])

    # Layer 2: (bt, 128)bf16 @ (128, 256)bf16 -> f32 acc.
    h = jnp.dot(h.astype(jnp.bfloat16), w2_ref[...], preferred_element_type=jnp.float32)
    h = _leaky_relu(h + b2_ref[...])

    # Layer 3: (bt, 256)bf16 @ (256, 640)bf16 -> f32 acc, bias in f32.
    h = jnp.dot(h.astype(jnp.bfloat16), w3_ref[...], preferred_element_type=jnp.float32)
    h = h + b3_ref[...]

    # sigmoid(x) = 0.5*(tanh(x/2)+1): single exact EUP transcendental, numerically
    # stable for large-magnitude pre-activations.
    o_ref[...] = (0.5 * (jnp.tanh(0.5 * h) + 1.0)).astype(o_ref.dtype)


def generator1_forward(z, prepped_params, *, max_batch_tile=MAX_BATCH_TILE,
                       out_dtype=jnp.bfloat16):
    """z: (B, latent_dim) float32 -> img1: (B, 1, 5, 128) out_dtype.

    prepped_params: output of prepare_params (bf16 weights, f32 biases).
    out_dtype defaults to bf16 (memory-bound kernel: halves the dominant HBM
    write traffic); pass jnp.float32 for bit-for-bit parity with an f32 consumer.
    """
    w1_bf, b1, w2_bf, b2, w3_bf, b3 = prepped_params
    B, ld = z.shape

    bt = _choose_batch_tile(B, max_batch_tile)
    B_pad = _round_up(B, bt)
    if B_pad != B:
        z = jnp.pad(z, ((0, B_pad - B), (0, 0)))  # padded rows sliced off below

    grid = (B_pad // bt,)
    full = lambda i: (0, 0)  # weights / biases: same block every grid step

    out = pl.pallas_call(
        generator1_kernel,
        out_shape=jax.ShapeDtypeStruct((B_pad, OUT), out_dtype),
        grid_spec=pltpu.PrefetchScalarGridSpec(
            num_scalar_prefetch=0,
            grid=grid,
            in_specs=[
                pl.BlockSpec((bt, ld), lambda i: (i, 0)),   # z tile (f32, cast in-kernel)
                pl.BlockSpec((ld, H1), full),               # W1 (bf16)
                pl.BlockSpec((1, H1), full),                # b1 (f32)
                pl.BlockSpec((H1, H2), full),               # W2 (bf16)
                pl.BlockSpec((1, H2), full),                # b2 (f32)
                pl.BlockSpec((H2, OUT), full),              # W3 (bf16)
                pl.BlockSpec((1, OUT), full),               # b3 (f32)
            ],
            out_specs=pl.BlockSpec((bt, OUT), lambda i: (i, 0)),  # lane-dense 640
        ),
        compiler_params=pltpu.CompilerParams(
            # batch axis shards across both TensorCores on v7x (grid >= 2 steps)
            dimension_semantics=("parallel",),
            # explicit budget: bt=1024 tiles use ~10-12 MiB, well inside 48 MiB
            # and inside v7x's 64 MiB physical VMEM.
            vmem_limit_bytes=48 * 1024 * 1024,
        ),
    )(z, w1_bf, b1, w2_bf, b2, w3_bf, b3)

    out = out[:B]
    # img1 = img1.view(B, *image_shape1) with image_shape1 == (1, 5, 128)
    return out.reshape(B, 1, 5, 128)


def init_params(key):
    """Deterministic synthetic init (PyTorch-default-ish uniform fan-in scaling), f32."""
    ks = jax.random.split(key, 6)

    def lin(kw, kb, fan_in, fan_out):
        bound = 1.0 / jnp.sqrt(fan_in)
        w = jax.random.uniform(kw, (fan_in, fan_out), jnp.float32, -bound, bound)
        b = jax.random.uniform(kb, (1, fan_out), jnp.float32, -bound, bound)
        return w, b

    w1, b1 = lin(ks[0], ks[1], LATENT_DIM, H1)
    w2, b2 = lin(ks[2], ks[3], H1, H2)
    w3, b3 = lin(ks[4], ks[5], H2, OUT)
    return (w1, b1, w2, b2, w3, b3)


def prepare_params(params):
    """One-time cast of weights to bf16 (hoisted out of the per-call forward);
    biases stay f32 (added to the f32 accumulator in-kernel)."""
    w1, b1, w2, b2, w3, b3 = params
    return (w1.astype(jnp.bfloat16), b1,
            w2.astype(jnp.bfloat16), b2,
            w3.astype(jnp.bfloat16), b3)


def reference_forward(z, params):
    """Pure-JAX f32 reference of the PyTorch forward."""
    w1, b1, w2, b2, w3, b3 = params
    h = _leaky_relu(z @ w1 + b1)
    h = _leaky_relu(h @ w2 + b2)
    h = jax.nn.sigmoid(h @ w3 + b3)
    return h.reshape(z.shape[0], 1, 5, 128)


if __name__ == "__main__":
    key = jax.random.PRNGKey(0)
    k_z, k_p = jax.random.split(key)

    B = 8
    z = jax.random.normal(k_z, (B, LATENT_DIM), dtype=jnp.float32)
    params = init_params(k_p)
    prepped = prepare_params(params)   # one-time bf16 weight cast

    img1 = generator1_forward(z, prepped)
    img1 = jax.block_until_ready(img1)

    ref = reference_forward(z, params)
    assert img1.shape == (B, 1, 5, 128), img1.shape
    # bf16 matmul operands + bf16 output -> loosened tolerance vs the f32 reference.
    diff = jnp.max(jnp.abs(img1.astype(jnp.float32) - ref))
    assert jnp.allclose(img1.astype(jnp.float32), ref, atol=2e-2, rtol=2e-2), (
        "mismatch vs reference, max abs diff = %f" % float(diff))

    print("KERNEL_OK")
</pallas_src>

<mosaic_0001>
module attributes {stable_mosaic.version = 11 : i64} {
  func.func @generator1_kernel(%arg0: i32, %arg1: memref<8x32xf32, #tpu.memory_space<vmem>>, %arg2: memref<32x128xbf16, #tpu.memory_space<vmem>>, %arg3: memref<1x128xf32, #tpu.memory_space<vmem>>, %arg4: memref<128x256xbf16, #tpu.memory_space<vmem>>, %arg5: memref<1x256xf32, #tpu.memory_space<vmem>>, %arg6: memref<256x640xbf16, #tpu.memory_space<vmem>>, %arg7: memref<1x640xf32, #tpu.memory_space<vmem>>, %arg8: memref<8x640xbf16, #tpu.memory_space<vmem>>) attributes {dimension_semantics = [#tpu.dimension_semantics<parallel>], iteration_bounds = array<i64: 1>, scalar_prefetch = 0 : i64, scratch_operands = 0 : i64, tpu.core_type = #tpu.core_type<tc>, window_params = [{transform_indices = @transform_0, window_bounds = array<i64: 8, 32>}, {pipeline_mode = #tpu.pipeline_mode<synchronous>, transform_indices = @transform_1, window_bounds = array<i64: 32, 128>}, {pipeline_mode = #tpu.pipeline_mode<synchronous>, transform_indices = @transform_2, window_bounds = array<i64: 1, 128>}, {pipeline_mode = #tpu.pipeline_mode<synchronous>, transform_indices = @transform_3, window_bounds = array<i64: 128, 256>}, {pipeline_mode = #tpu.pipeline_mode<synchronous>, transform_indices = @transform_4, window_bounds = array<i64: 1, 256>}, {pipeline_mode = #tpu.pipeline_mode<synchronous>, transform_indices = @transform_5, window_bounds = array<i64: 256, 640>}, {pipeline_mode = #tpu.pipeline_mode<synchronous>, transform_indices = @transform_6, window_bounds = array<i64: 1, 640>}, {transform_indices = @transform_7, window_bounds = array<i64: 8, 640>}]} {
    %c0 = arith.constant 0 : index
    %c0_0 = arith.constant 0 : index
    %0 = vector.load %arg1[%c0, %c0_0] : memref<8x32xf32, #tpu.memory_space<vmem>>, vector<8x32xf32>
    %1 = arith.truncf %0 : vector<8x32xf32> to vector<8x32xbf16>
    %c0_1 = arith.constant 0 : index
    %c0_2 = arith.constant 0 : index
    %2 = vector.load %arg2[%c0_1, %c0_2] : memref<32x128xbf16, #tpu.memory_space<vmem>>, vector<32x128xbf16>
    %cst = arith.constant dense<0.000000e+00> : vector<8x128xf32>
    %3 = tpu.matmul %1, %2, %cst {dimension_numbers = #tpu.dot_dimension_numbers<[1], [0], [0], [1], [0, 0, 1, 1], [], []>} : vector<8x32xbf16>, vector<32x128xbf16>, vector<8x128xf32> -> vector<8x128xf32>
    %c0_3 = arith.constant 0 : index
    %c0_4 = arith.constant 0 : index
    %4 = vector.load %arg3[%c0_3, %c0_4] : memref<1x128xf32, #tpu.memory_space<vmem>>, vector<1x128xf32>
    %5 = vector.broadcast %4 : vector<1x128xf32> to vector<8x128xf32>
    %6 = arith.addf %3, %5 : vector<8x128xf32>
    %cst_5 = arith.constant 0.000000e+00 : f32
    %7 = vector.broadcast %cst_5 : f32 to vector<8x128xf32>
    %8 = arith.cmpf ogt, %6, %7 : vector<8x128xf32>
    %cst_6 = arith.constant 2.000000e-02 : f32
    %9 = vector.broadcast %cst_6 : f32 to vector<8x128xf32>
    %10 = arith.mulf %9, %6 : vector<8x128xf32>
    %11 = arith.select %8, %6, %10 : vector<8x128xi1>, vector<8x128xf32>
    %12 = arith.truncf %11 : vector<8x128xf32> to vector<8x128xbf16>
    %c0_7 = arith.constant 0 : index
    %c0_8 = arith.constant 0 : index
    %13 = vector.load %arg4[%c0_7, %c0_8] : memref<128x256xbf16, #tpu.memory_space<vmem>>, vector<128x256xbf16>
    %cst_9 = arith.constant dense<0.000000e+00> : vector<8x256xf32>
    %14 = tpu.matmul %12, %13, %cst_9 {dimension_numbers = #tpu.dot_dimension_numbers<[1], [0], [0], [1], [0, 0, 1, 1], [], []>} : vector<8x128xbf16>, vector<128x256xbf16>, vector<8x256xf32> -> vector<8x256xf32>
    %c0_10 = arith.constant 0 : index
    %c0_11 = arith.constant 0 : index
    %15 = vector.load %arg5[%c0_10, %c0_11] : memref<1x256xf32, #tpu.memory_space<vmem>>, vector<1x256xf32>
    %16 = vector.broadcast %15 : vector<1x256xf32> to vector<8x256xf32>
    %17 = arith.addf %14, %16 : vector<8x256xf32>
    %cst_12 = arith.constant 0.000000e+00 : f32
    %18 = vector.broadcast %cst_12 : f32 to vector<8x256xf32>
    %19 = arith.cmpf ogt, %17, %18 : vector<8x256xf32>
    %cst_13 = arith.constant 2.000000e-02 : f32
    %20 = vector.broadcast %cst_13 : f32 to vector<8x256xf32>
    %21 = arith.mulf %20, %17 : vector<8x256xf32>
    %22 = arith.select %19, %17, %21 : vector<8x256xi1>, vector<8x256xf32>
    %23 = arith.truncf %22 : vector<8x256xf32> to vector<8x256xbf16>
    %c0_14 = arith.constant 0 : index
    %c0_15 = arith.constant 0 : index
    %24 = vector.load %arg6[%c0_14, %c0_15] : memref<256x640xbf16, #tpu.memory_space<vmem>>, vector<256x640xbf16>
    %cst_16 = arith.constant dense<0.000000e+00> : vector<8x640xf32>
    %25 = tpu.matmul %23, %24, %cst_16 {dimension_numbers = #tpu.dot_dimension_numbers<[1], [0], [0], [1], [0, 0, 1, 1], [], []>} : vector<8x256xbf16>, vector<256x640xbf16>, vector<8x640xf32> -> vector<8x640xf32>
    %c0_17 = arith.constant 0 : index
    %c0_18 = arith.constant 0 : index
    %26 = vector.load %arg7[%c0_17, %c0_18] : memref<1x640xf32, #tpu.memory_space<vmem>>, vector<1x640xf32>
    %27 = vector.broadcast %26 : vector<1x640xf32> to vector<8x640xf32>
    %28 = arith.addf %25, %27 : vector<8x640xf32>
    %cst_19 = arith.constant 5.000000e-01 : f32
    %29 = vector.broadcast %cst_19 : f32 to vector<8x640xf32>
    %30 = arith.mulf %29, %28 : vector<8x640xf32>
    %31 = math.tanh %30 : vector<8x640xf32>
    %cst_20 = arith.constant 1.000000e+00 : f32
    %32 = vector.broadcast %cst_20 : f32 to vector<8x640xf32>
    %33 = arith.addf %31, %32 : vector<8x640xf32>
    %cst_21 = arith.constant 5.000000e-01 : f32
    %34 = vector.broadcast %cst_21 : f32 to vector<8x640xf32>
    %35 = arith.mulf %34, %33 : vector<8x640xf32>
    %36 = arith.truncf %35 : vector<8x640xf32> to vector<8x640xbf16>
    %c0_22 = arith.constant 0 : index
    %c0_23 = arith.constant 0 : index
    %37 = vector.load %arg8[%c0_22, %c0_23] : memref<8x640xbf16, #tpu.memory_space<vmem>>, vector<8x640xbf16>
    tpu.vector_store %arg8[%c0_22, %c0_23], %36 {strides = array<i32>} : memref<8x640xbf16, #tpu.memory_space<vmem>>, vector<8x640xbf16>,
    return
  }
  func.func @transform_0(%arg0: i32) -> (i32, i32) {
    %c0_i32 = arith.constant 0 : i32
    %c0_i32_0 = arith.constant 0 : i32
    return %arg0, %c0_i32 : i32, i32
  }
  func.func @transform_1(%arg0: i32) -> (i32, i32) {
    %c0_i32 = arith.constant 0 : i32
    %c0_i32_0 = arith.constant 0 : i32
    %c0_i32_1 = arith.constant 0 : i32
    return %c0_i32, %c0_i32_0 : i32, i32
  }
  func.func @transform_2(%arg0: i32) -> (i32, i32) {
    %c0_i32 = arith.constant 0 : i32
    %c0_i32_0 = arith.constant 0 : i32
    %c0_i32_1 = arith.constant 0 : i32
    return %c0_i32, %c0_i32_0 : i32, i32
  }
  func.func @transform_3(%arg0: i32) -> (i32, i32) {
    %c0_i32 = arith.constant 0 : i32
    %c0_i32_0 = arith.constant 0 : i32
    %c0_i32_1 = arith.constant 0 : i32
    return %c0_i32, %c0_i32_0 : i32, i32
  }
  func.func @transform_4(%arg0: i32) -> (i32, i32) {
    %c0_i32 = arith.constant 0 : i32
    %c0_i32_0 = arith.constant 0 : i32
    %c0_i32_1 = arith.constant 0 : i32
    return %c0_i32, %c0_i32_0 : i32, i32
  }
  func.func @transform_5(%arg0: i32) -> (i32, i32) {
    %c0_i32 = arith.constant 0 : i32
    %c0_i32_0 = arith.constant 0 : i32
    %c0_i32_1 = arith.constant 0 : i32
    return %c0_i32, %c0_i32_0 : i32, i32
  }
  func.func @transform_6(%arg0: i32) -> (i32, i32) {
    %c0_i32 = arith.constant 0 : i32
    %c0_i32_0 = arith.constant 0 : i32
    %c0_i32_1 = arith.constant 0 : i32
    return %c0_i32, %c0_i32_0 : i32, i32
  }
  func.func @transform_7(%arg0: i32) -> (i32, i32) {
    %c0_i32 = arith.constant 0 : i32
    %c0_i32_0 = arith.constant 0 : i32
    return %arg0, %c0_i32 : i32, i32
  }
}

</mosaic_0001>

<llo_original>
// kernel: tpu_custom_call.1
$region0: #{tpu_custom_call.1}
  #allocation0 [shape = 'u32[]', space=smem, size = 0x4, offset = 0x4, fixed_abs, tag = 'smem constant byte address 0x4 - core index']
  #allocation1 [shape = 'u32[144,128]{1,0:T(1,128)}', space=vmem, size = 0x12000, scoped, tag = 'internal scratch']
  %s0 = inlined_call_operand.hbm [shape: f32[8,32], index: 0, kind: input, shape index: {}]
  %s1 = inlined_call_operand.hbm [shape: bf16[32,128], index: 1, kind: input, shape index: {}]
  %s2 = inlined_call_operand.vmem [shape: f32[1,128], index: 2, kind: input, shape index: {}]
  %s3 = inlined_call_operand.hbm [shape: bf16[128,256], index: 3, kind: input, shape index: {}]
  %s4 = inlined_call_operand.vmem [shape: f32[1,256], index: 4, kind: input, shape index: {}]
  %s5 = inlined_call_operand.hbm [shape: bf16[256,640], index: 5, kind: input, shape index: {}]
  %s6 = inlined_call_operand.vmem [shape: f32[1,640], index: 6, kind: input, shape index: {}]
  %s7 = inlined_call_operand.hbm [shape: bf16[8,640], index: 7, kind: output, shape index: {}]
  %s8 = sld [smem:[#allocation0]]
  $region54: #{tpu_custom_call.1} parent=0
    _
  %s10 = ssub.s32 1, %s8
  %s11 = scalar_select 0, %s10, %s8
  $region1: #{tpu_custom_call.1} parent=0
    #allocation2 [shape = 'u8[4096]{0}', space=vmem, size = 0x1000, scoped, tag = 'input window, operand 0, single buffered']
    #allocation3 [shape = 's32[1]{0}', space=sflag, size = 0x4, scoped, tag = 'scoped memory for tpu_custom_call.1']
    #allocation4 [shape = 's32[1]{0}', space=sflag, size = 0x4, scoped, tag = 'scoped memory for tpu_custom_call.1']
    #allocation5 [shape = 'u8[8192]{0}', space=vmem, size = 0x2000, scoped, tag = 'input window, operand 1, single buffered']
    #allocation6 [shape = 's32[1]{0}', space=sflag, size = 0x4, scoped, tag = 'scoped memory for tpu_custom_call.1']
    #allocation7 [shape = 'u8[65536]{0}', space=vmem, size = 0x10000, scoped, tag = 'input window, operand 3, single buffered']
    #allocation8 [shape = 'u8[327680]{0}', space=vmem, size = 0x50000, scoped, tag = 'input window, operand 5, single buffered']
    #allocation9 [shape = 's32[1]{0}', space=sflag, size = 0x4, scoped, tag = 'scoped memory for tpu_custom_call.1']
    #allocation10 [shape = 'u8[10240]{0}', space=vmem, size = 0x2800, scoped, tag = 'output window, operand 0, single buffered']
    %12 = vsyncpa [#allocation3], 0
    %13 = vsyncpa [#allocation6], 0
    %14 = vsyncpa [#allocation9], 0
    %15 = vsyncpa [#allocation4], 0
    // Predicated region
    $region2: #{tpu_custom_call.1} parent=1 // pred_check
      _
    $region3: #{tpu_custom_call.1} parent=1 // pred_check_branch
      %17 = sbr.rel (0) target = $region5
    $region4: #{tpu_custom_call.1} parent=1 // pred_region
      %s19 = ssub.s32 128, 128
      %20 = vsyncadd [#allocation3], %s19
      %s22 = sshll.u32 [#allocation2], 4
      %s23 = int_to_ptr.vmem [resolvable:$true] %s22
      %25 = dma.hbm_to_vmem [thread:$0]  %s0, 128, %s23, [#allocation3]
    $region5: #{tpu_custom_call.1} parent=1 // pred_fallthru
      _
    // Predicated region
    $region6: #{tpu_custom_call.1} parent=1 // pred_check
      _
    $region7: #{tpu_custom_call.1} parent=1 // pred_check_branch
      %27 = sbr.rel (0) target = $region9
    $region8: #{tpu_custom_call.1} parent=1 // pred_region
      %s29 = ssub.s32 256, 256
      %30 = vsyncadd [#allocation6], %s29
      %s31 = sshll.u32 [#allocation5], 4
      %s32 = int_to_ptr.vmem [resolvable:$true] %s31
      %37 = dma.hbm_to_vmem [thread:$0]  %s1, 256, %s32, [#allocation6], 64, 64, 4
    $region9: #{tpu_custom_call.1} parent=1 // pred_fallthru
      _
    // Predicated region
    $region10: #{tpu_custom_call.1} parent=1 // pred_check
      _
    $region11: #{tpu_custom_call.1} parent=1 // pred_check_branch
      %39 = sbr.rel (0) target = $region13
    $region12: #{tpu_custom_call.1} parent=1 // pred_region
      _
    $region13: #{tpu_custom_call.1} parent=1 // pred_fallthru
      _
    // Predicated region
    $region14: #{tpu_custom_call.1} parent=1 // pred_check
      _
    $region15: #{tpu_custom_call.1} parent=1 // pred_check_branch
      %41 = sbr.rel (0) target = $region17
    $region16: #{tpu_custom_call.1} parent=1 // pred_region
      %s43 = ssub.s32 2048, 2048
      %44 = vsyncadd [#allocation6], %s43
      %s45 = sshll.u32 [#allocation7], 4
      %s46 = int_to_ptr.vmem [resolvable:$true] %s45
      %51 = dma.hbm_to_vmem [thread:$0]  %s3, 2048, %s46, [#allocation6], 128, 128, 8
    $region17: #{tpu_custom_call.1} parent=1 // pred_fallthru
      _
    // Predicated region
    $region18: #{tpu_custom_call.1} parent=1 // pred_check
      _
    $region19: #{tpu_custom_call.1} parent=1 // pred_check_branch
      %53 = sbr.rel (0) target = $region21
    $region20: #{tpu_custom_call.1} parent=1 // pred_region
      _
    $region21: #{tpu_custom_call.1} parent=1 // pred_fallthru
      _
    // Predicated region
    $region22: #{tpu_custom_call.1} parent=1 // pred_check
      _
    $region23: #{tpu_custom_call.1} parent=1 // pred_check_branch
      %55 = sbr.rel (0) target = $region25
    $region24: #{tpu_custom_call.1} parent=1 // pred_region
      %s57 = ssub.s32 10240, 10240
      %58 = vsyncadd [#allocation9], %s57
      %s59 = sshll.u32 [#allocation8], 4
      %s60 = int_to_ptr.vmem [resolvable:$true] %s59
      %65 = dma.hbm_to_vmem [thread:$0]  %s5, 10240, %s60, [#allocation9], 320, 320, 20
    $region25: #{tpu_custom_call.1} parent=1 // pred_fallthru
      _
    // Predicated region
    $region26: #{tpu_custom_call.1} parent=1 // pred_check
      _
    $region27: #{tpu_custom_call.1} parent=1 // pred_check_branch
      %67 = sbr.rel (0) target = $region29
    $region28: #{tpu_custom_call.1} parent=1 // pred_region
      _
    $region29: #{tpu_custom_call.1} parent=1 // pred_fallthru
      _
    // Predicated region
    $region30: #{tpu_custom_call.1} parent=1 // pred_check
      _
    $region31: #{tpu_custom_call.1} parent=1 // pred_check_branch
      %69 = sbr.rel (0) target = $region33
    $region32: #{tpu_custom_call.1} parent=1 // pred_region
      %70 = dma.done [#allocation3], 128
    $region33: #{tpu_custom_call.1} parent=1 // pred_fallthru
      _
    // Predicated region
    $region34: #{tpu_custom_call.1} parent=1 // pred_check
      _
    $region35: #{tpu_custom_call.1} parent=1 // pred_check_branch
      %72 = sbr.rel (0) target = $region37
    $region36: #{tpu_custom_call.1} parent=1 // pred_region
      %73 = dma.done [#allocation6], 256
    $region37: #{tpu_custom_call.1} parent=1 // pred_fallthru
      _
    // Predicated region
    $region38: #{tpu_custom_call.1} parent=1 // pred_check
      _
    $region39: #{tpu_custom_call.1} parent=1 // pred_check_branch
      %75 = sbr.rel (0) target = $region41
    $region40: #{tpu_custom_call.1} parent=1 // pred_region
      %76 = dma.done [#allocation6], 2048
    $region41: #{tpu_custom_call.1} parent=1 // pred_fallthru
      _
    // Predicated region
    $region42: #{tpu_custom_call.1} parent=1 // pred_check
      _
    $region43: #{tpu_custom_call.1} parent=1 // pred_check_branch
      %78 = sbr.rel (0) target = $region45
    $region44: #{tpu_custom_call.1} parent=1 // pred_region
      %79 = dma.done [#allocation9], 10240
    $region45: #{tpu_custom_call.1} parent=1 // pred_fallthru
      _
    %v81 = vld [vmem:[#allocation2] sm:$0xff]
    %v82 = vpack.c.bf16 %v81, %v81
    %v83 = vld [vmem:[#allocation5] sm:$0xf]
    %v84 = vld [vmem:[#allocation5 + $0x4] sm:$0xf]
    %v85 = vld [vmem:[#allocation5 + $0x8] sm:$0xf]
    %v86 = vld [vmem:[#allocation5 + $0xc] sm:$0xf]
    %v87 = vld [vmem:[%s2] sm:$0x1]
    %v89 = vlaneseq
    %v90 = vshrl.u32 %v89, 7
    %v91 = vsub.s32 0, %v90
    %v92 = vrot.slane %v87, %v91
    %v98 = vunpack.c.l.b16 %v83
    %v99 = vunpack.c.l.b16 %v84
    %v100 = vunpack.c.l.b16 %v85
    %v101 = vunpack.c.l.b16 %v86
    %v102 = vpack.c.b16 %v99, %v98
    %v103 = vpack.c.b16 %v101, %v100
    %vm106 = vcmask 261120
    %v108 = vsel %vm106, %v82, 0
    %110 = vmatprep.subr.bf16.mxu0 0
    %111 = vmatpush1.bf16.msra.mxu0 0
    %112 = vmatprep.subr.bf16.mxu0 0
    %113 = vmatpush1.bf16.msra.mxu0 0
    %114 = vmatprep.subr.bf16.mxu0 0
    %115 = vmatpush1.bf16.msra.mxu0 0
    %116 = vmatprep.subr.bf16.mxu0 0
    %117 = vmatpush1.bf16.msra.mxu0 0
    %118 = vmatprep.subr.bf16.mxu0 0
    %119 = vmatpush1.bf16.msra.mxu0 0
    %120 = vmatprep.subr.bf16.mxu0 0
    %121 = vmatpush1.bf16.msra.mxu0 0
    %122 = vmatprep.subr.bf16.mxu0 0
    %123 = vmatpush1.bf16.msra.mxu0 %v103
    %124 = vmatprep.subr.bf16.mxu0 0
    %125 = vmatpush1.bf16.msra.mxu0 %v102
    %126 = vmatprep.subr.bf16.mxu0 0
    %127 = vmatpush2.bf16.msra.mxu0 0
    %128 = vmatprep.subr.bf16.mxu0 0
    %129 = vmatpush2.bf16.msra.mxu0 0
    %130 = vmatprep.subr.bf16.mxu0 0
    %131 = vmatpush2.bf16.msra.mxu0 0
    %132 = vmatprep.subr.bf16.mxu0 0
    %133 = vmatpush2.bf16.msra.mxu0 0
    %134 = vmatprep.subr.bf16.mxu0 0
    %135 = vmatpush2.bf16.msra.mxu0 0
    %136 = vmatprep.subr.bf16.mxu0 0
    %137 = vmatpush2.bf16.msra.mxu0 0
    %138 = vmatprep.subr.bf16.mxu0 0
    %139 = vmatpush2.bf16.msra.mxu0 0
    %140 = vmatprep.subr.bf16.mxu0 0
    %141 = vmatpush2.bf16.msra.mxu0 0
    %142 = vmatprep.mubr.bf16.mxu0 0
    %143 = vmatmul.mubr.bf16.gmra.mxu0 %v108
    %v144 = vpop.f32.mrf.mxu0
    %v145 = vadd.f32 %v92, %v144
    %v146 = vpop.f32.mrf.mxu0
    %v147 = vpop.f32.mrf.mxu0
    %v148 = vpop.f32.mrf.mxu0
    %149 = vdwg.mxu0
    %vm150 = vcmp.gt.f32.partialorder %v145, 0.0
    %v151 = vmul.f32 %v145, 0.02
    %v152 = vsel %vm150, %v145, %v151
    %v153 = vpack.c.bf16 %v152, %v152
    %v154 = vld [vmem:[#allocation7] sm:$0xff]
    %v155 = vld [vmem:[#allocation7 + $0x8] sm:$0xff]
    %v156 = vld [vmem:[#allocation7 + $0x10] sm:$0xff]
    %v157 = vld [vmem:[#allocation7 + $0x18] sm:$0xff]
    %v158 = vld [vmem:[#allocation7 + $0x20] sm:$0xff]
    %v159 = vld [vmem:[#allocation7 + $0x28] sm:$0xff]
    %v160 = vld [vmem:[#allocation7 + $0x30] sm:$0xff]
    %v161 = vld [vmem:[#allocation7 + $0x38] sm:$0xff]
    %v162 = vld [vmem:[#allocation7 + $0x40] sm:$0xff]
    %v163 = vld [vmem:[#allocation7 + $0x48] sm:$0xff]
    %v164 = vld [vmem:[#allocation7 + $0x50] sm:$0xff]
    %v165 = vld [vmem:[#allocation7 + $0x58] sm:$0xff]
    %v166 = vld [vmem:[#allocation7 + $0x60] sm:$0xff]
    %v167 = vld [vmem:[#allocation7 + $0x68] sm:$0xff]
    %v168 = vld [vmem:[#allocation7 + $0x70] sm:$0xff]
    %v169 = vld [vmem:[#allocation7 + $0x78] sm:$0xff]
    %v170 = vld [vmem:[%s4] sm:$0x3]
    %v172 = vlaneseq
    %v173 = vshrl.u32 %v172, 7
    %v174 = vsub.s32 0, %v173
    %v175 = vrot.slane %v170, %v174
    %v176 = vlaneseq
    %v177 = vshrl.u32 %v176, 7
    %v178 = vsub.s32 1, %v177
    %v179 = vrot.slane %v170, %v178
    %v198 = vunpack.c.l.b16 %v154
    %v199 = vunpack.c.h.b16 %v154
    %v200 = vunpack.c.l.b16 %v155
    %v201 = vunpack.c.h.b16 %v155
    %v202 = vunpack.c.l.b16 %v156
    %v203 = vunpack.c.h.b16 %v156
    %v204 = vunpack.c.l.b16 %v157
    %v205 = vunpack.c.h.b16 %v157
    %v206 = vunpack.c.l.b16 %v158
    %v207 = vunpack.c.h.b16 %v158
    %v208 = vunpack.c.l.b16 %v159
    %v209 = vunpack.c.h.b16 %v159
    %v210 = vunpack.c.l.b16 %v160
    %v211 = vunpack.c.h.b16 %v160
    %v212 = vunpack.c.l.b16 %v161
    %v213 = vunpack.c.h.b16 %v161
    %v214 = vunpack.c.l.b16 %v162
    %v215 = vunpack.c.h.b16 %v162
    %v216 = vunpack.c.l.b16 %v163
    %v217 = vunpack.c.h.b16 %v163
    %v218 = vunpack.c.l.b16 %v164
    %v219 = vunpack.c.h.b16 %v164
    %v220 = vunpack.c.l.b16 %v165
    %v221 = vunpack.c.h.b16 %v165
    %v222 = vunpack.c.l.b16 %v166
    %v223 = vunpack.c.h.b16 %v166
    %v224 = vunpack.c.l.b16 %v167
    %v225 = vunpack.c.h.b16 %v167
    %v226 = vunpack.c.l.b16 %v168
    %v227 = vunpack.c.h.b16 %v168
    %v228 = vunpack.c.l.b16 %v169
    %v229 = vunpack.c.h.b16 %v169
    %v230 = vpack.c.b16 %v200, %v198
    %v231 = vpack.c.b16 %v201, %v199
    %v232 = vpack.c.b16 %v204, %v202
    %v233 = vpack.c.b16 %v205, %v203
    %v234 = vpack.c.b16 %v208, %v206
    %v235 = vpack.c.b16 %v209, %v207
    %v236 = vpack.c.b16 %v212, %v210
    %v237 = vpack.c.b16 %v213, %v211
    %v238 = vpack.c.b16 %v216, %v214
    %v239 = vpack.c.b16 %v217, %v215
    %v240 = vpack.c.b16 %v220, %v218
    %v241 = vpack.c.b16 %v221, %v219
    %v242 = vpack.c.b16 %v224, %v222
    %v243 = vpack.c.b16 %v225, %v223
    %v244 = vpack.c.b16 %v228, %v226
    %v245 = vpack.c.b16 %v229, %v227
    %262 = vmatprep.subr.bf16.mxu0 %v245
    %263 = vmatpush1.bf16.msra.mxu0 %v244
    %264 = vmatprep.subr.bf16.mxu0 %v243
    %265 = vmatpush1.bf16.msra.mxu0 %v242
    %266 = vmatprep.subr.bf16.mxu0 %v241
    %267 = vmatpush1.bf16.msra.mxu0 %v240
    %268 = vmatprep.subr.bf16.mxu0 %v239
    %269 = vmatpush1.bf16.msra.mxu0 %v238
    %270 = vmatprep.subr.bf16.mxu0 %v237
    %271 = vmatpush1.bf16.msra.mxu0 %v236
    %272 = vmatprep.subr.bf16.mxu0 %v235
    %273 = vmatpush1.bf16.msra.mxu0 %v234
    %274 = vmatprep.subr.bf16.mxu0 %v233
    %275 = vmatpush1.bf16.msra.mxu0 %v232
    %276 = vmatprep.subr.bf16.mxu0 %v231
    %277 = vmatpush1.bf16.msra.mxu0 %v230
    %278 = vmatprep.subr.bf16.mxu0 0
    %279 = vmatpush2.bf16.msra.mxu0 0
    %280 = vmatprep.subr.bf16.mxu0 0
    %281 = vmatpush2.bf16.msra.mxu0 0
    %282 = vmatprep.subr.bf16.mxu0 0
    %283 = vmatpush2.bf16.msra.mxu0 0
    %284 = vmatprep.subr.bf16.mxu0 0
    %285 = vmatpush2.bf16.msra.mxu0 0
    %286 = vmatprep.subr.bf16.mxu0 0
    %287 = vmatpush2.bf16.msra.mxu0 0
    %288 = vmatprep.subr.bf16.mxu0 0
    %289 = vmatpush2.bf16.msra.mxu0 0
    %290 = vmatprep.subr.bf16.mxu0 0
    %291 = vmatpush2.bf16.msra.mxu0 0
    %292 = vmatprep.subr.bf16.mxu0 0
    %293 = vmatpush2.bf16.msra.mxu0 0
    %294 = vmatprep.mubr.bf16.mxu0 0
    %295 = vmatmul.mubr.bf16.gmra.mxu0 %v153
    %v296 = vpop.f32.mrf.mxu0
    %v297 = vadd.f32 %v175, %v296
    %v298 = vpop.f32.mrf.mxu0
    %v299 = vadd.f32 %v179, %v298
    %v300 = vpop.f32.mrf.mxu0
    %v301 = vpop.f32.mrf.mxu0
    %302 = vdwg.mxu0
    %vm303 = vcmp.gt.f32.partialorder %v297, 0.0
    %vm304 = vcmp.gt.f32.partialorder %v299, 0.0
    %v305 = vmul.f32 %v297, 0.02
    %v306 = vmul.f32 %v299, 0.02
    %v307 = vsel %vm303, %v297, %v305
    %v308 = vsel %vm304, %v299, %v306
    %v309 = vpack.c.bf16 %v307, %v307
    %v310 = vpack.c.bf16 %v308, %v308
    %v311 = vld [vmem:[#allocation8] sm:$0xff]
    %v312 = vld [vmem:[#allocation8 + $0x8] sm:$0xff]
    %v313 = vld [vmem:[#allocation8 + $0x10] sm:$0xf]
    %v314 = vld [vmem:[#allocation8 + $0x14] sm:$0xff]
    %v315 = vld [vmem:[#allocation8 + $0x1c] sm:$0xff]
    %v316 = vld [vmem:[#allocation8 + $0x24] sm:$0xf]
    %v317 = vld [vmem:[#allocation8 + $0x28] sm:$0xff]
    %v318 = vld [vmem:[#allocation8 + $0x30] sm:$0xff]
    %v319 = vld [vmem:[#allocation8 + $0x38] sm:$0xf]
    %v320 = vld [vmem:[#allocation8 + $0x3c] sm:$0xff]
    %v321 = vld [vmem:[#allocation8 + $0x44] sm:$0xff]
    %v322 = vld [vmem:[#allocation8 + $0x4c] sm:$0xf]
    %v323 = vld [vmem:[#allocation8 + $0x50] sm:$0xff]
    %v324 = vld [vmem:[#allocation8 + $0x58] sm:$0xff]
    %v325 = vld [vmem:[#allocation8 + $0x60] sm:$0xf]
    %v326 = vld [vmem:[#allocation8 + $0x64] sm:$0xff]
    %v327 = vld [vmem:[#allocation8 + $0x6c] sm:$0xff]
    %v328 = vld [vmem:[#allocation8 + $0x74] sm:$0xf]
    %v329 = vld [vmem:[#allocation8 + $0x78] sm:$0xff]
    %v330 = vld [vmem:[#allocation8 + $0x80] sm:$0xff]
    %v331 = vld [vmem:[#allocation8 + $0x88] sm:$0xf]
    %v332 = vld [vmem:[#allocation8 + $0x8c] sm:$0xff]
    %v333 = vld [vmem:[#allocation8 + $0x94] sm:$0xff]
    %v334 = vld [vmem:[#allocation8 + $0x9c] sm:$0xf]
    %v335 = vld [vmem:[#allocation8 + $0xa0] sm:$0xff]
    %v336 = vld [vmem:[#allocation8 + $0xa8] sm:$0xff]
    %v337 = vld [vmem:[#allocation8 + $0xb0] sm:$0xf]
    %v338 = vld [vmem:[#allocation8 + $0xb4] sm:$0xff]
    %v339 = vld [vmem:[#allocation8 + $0xbc] sm:$0xff]
    %v340 = vld [vmem:[#allocation8 + $0xc4] sm:$0xf]
    %v341 = vld [vmem:[#allocation8 + $0xc8] sm:$0xff]
    %v342 = vld [vmem:[#allocation8 + $0xd0] sm:$0xff]
    %v343 = vld [vmem:[#allocation8 + $0xd8] sm:$0xf]
    %v344 = vld [vmem:[#allocation8 + $0xdc] sm:$0xff]
    %v345 = vld [vmem:[#allocation8 + $0xe4] sm:$0xff]
    %v346 = vld [vmem:[#allocation8 + $0xec] sm:$0xf]
    %v347 = vld [vmem:[#allocation8 + $0xf0] sm:$0xff]
    %v348 = vld [vmem:[#allocation8 + $0xf8] sm:$0xff]
    %v349 = vld [vmem:[#allocation8 + $0x100] sm:$0xf]
    %v350 = vld [vmem:[#allocation8 + $0x104] sm:$0xff]
    %v351 = vld [vmem:[#allocation8 + $0x10c] sm:$0xff]
    %v352 = vld [vmem:[#allocation8 + $0x114] sm:$0xf]
    %v353 = vld [vmem:[#allocation8 + $0x118] sm:$0xff]
    %v354 = vld [vmem:[#allocation8 + $0x120] sm:$0xff]
    %v355 = vld [vmem:[#allocation8 + $0x128] sm:$0xf]
    %v356 = vld [vmem:[#allocation8 + $0x12c] sm:$0xff]
    %v357 = vld [vmem:[#allocation8 + $0x134] sm:$0xff]
    %v358 = vld [vmem:[#allocation8 + $0x13c] sm:$0xf]
    %v359 = vld [vmem:[#allocation8 + $0x140] sm:$0xff]
    %v360 = vld [vmem:[#allocation8 + $0x148] sm:$0xff]
    %v361 = vld [vmem:[#allocation8 + $0x150] sm:$0xf]
    %v362 = vld [vmem:[#allocation8 + $0x154] sm:$0xff]
    %v363 = vld [vmem:[#allocation8 + $0x15c] sm:$0xff]
    %v364 = vld [vmem:[#allocation8 + $0x164] sm:$0xf]
    %v365 = vld [vmem:[#allocation8 + $0x168] sm:$0xff]
    %v366 = vld [vmem:[#allocation8 + $0x170] sm:$0xff]
    %v367 = vld [vmem:[#allocation8 + $0x178] sm:$0xf]
    %v368 = vld [vmem:[#allocation8 + $0x17c] sm:$0xff]
    %v369 = vld [vmem:[#allocation8 + $0x184] sm:$0xff]
    %v370 = vld [vmem:[#allocation8 + $0x18c] sm:$0xf]
    %v371 = vld [vmem:[#allocation8 + $0x190] sm:$0xff]
    %v372 = vld [vmem:[#allocation8 + $0x198] sm:$0xff]
    %v373 = vld [vmem:[#allocation8 + $0x1a0] sm:$0xf]
    %v374 = vld [vmem:[#allocation8 + $0x1a4] sm:$0xff]
    %v375 = vld [vmem:[#allocation8 + $0x1ac] sm:$0xff]
    %v376 = vld [vmem:[#allocation8 + $0x1b4] sm:$0xf]
    %v377 = vld [vmem:[#allocation8 + $0x1b8] sm:$0xff]
    %v378 = vld [vmem:[#allocation8 + $0x1c0] sm:$0xff]
    %v379 = vld [vmem:[#allocation8 + $0x1c8] sm:$0xf]
    %v380 = vld [vmem:[#allocation8 + $0x1cc] sm:$0xff]
    %v381 = vld [vmem:[#allocation8 + $0x1d4] sm:$0xff]
    %v382 = vld [vmem:[#allocation8 + $0x1dc] sm:$0xf]
    %v383 = vld [vmem:[#allocation8 + $0x1e0] sm:$0xff]
    %v384 = vld [vmem:[#allocation8 + $0x1e8] sm:$0xff]
    %v385 = vld [vmem:[#allocation8 + $0x1f0] sm:$0xf]
    %v386 = vld [vmem:[#allocation8 + $0x1f4] sm:$0xff]
    %v387 = vld [vmem:[#allocation8 + $0x1fc] sm:$0xff]
    %v388 = vld [vmem:[#allocation8 + $0x204] sm:$0xf]
    %v389 = vld [vmem:[#allocation8 + $0x208] sm:$0xff]
    %v390 = vld [vmem:[#allocation8 + $0x210] sm:$0xff]
    %v391 = vld [vmem:[#allocation8 + $0x218] sm:$0xf]
    %v392 = vld [vmem:[#allocation8 + $0x21c] sm:$0xff]
    %v393 = vld [vmem:[#allocation8 + $0x224] sm:$0xff]
    %v394 = vld [vmem:[#allocation8 + $0x22c] sm:$0xf]
    %v395 = vld [vmem:[#allocation8 + $0x230] sm:$0xff]
    %v396 = vld [vmem:[#allocation8 + $0x238] sm:$0xff]
    %v397 = vld [vmem:[#allocation8 + $0x240] sm:$0xf]
    %v398 = vld [vmem:[#allocation8 + $0x244] sm:$0xff]
    %v399 = vld [vmem:[#allocation8 + $0x24c] sm:$0xff]
    %v400 = vld [vmem:[#allocation8 + $0x254] sm:$0xf]
    %v401 = vld [vmem:[#allocation8 + $0x258] sm:$0xff]
    %v402 = vld [vmem:[#allocation8 + $0x260] sm:$0xff]
    %v403 = vld [vmem:[#allocation8 + $0x268] sm:$0xf]
    %v404 = vld [vmem:[#allocation8 + $0x26c] sm:$0xff]
    %v405 = vld [vmem:[#allocation8 + $0x274] sm:$0xff]
    %v406 = vld [vmem:[#allocation8 + $0x27c] sm:$0xf]
    %v407 = vld [vmem:[%s6] sm:$0x1f]
    %v409 = vlaneseq
    %v410 = vshrl.u32 %v409, 7
    %v411 = vsub.s32 0, %v410
    %v412 = vrot.slane %v407, %v411
    %v413 = vlaneseq
    %v414 = vshrl.u32 %v413, 7
    %v415 = vsub.s32 1, %v414
    %v416 = vrot.slane %v407, %v415
    %v417 = vlaneseq
    %v418 = vshrl.u32 %v417, 7
    %v419 = vsub.s32 2, %v418
    %v420 = vrot.slane %v407, %v419
    %v421 = vlaneseq
    %v422 = vshrl.u32 %v421, 7
    %v423 = vsub.s32 3, %v422
    %v424 = vrot.slane %v407, %v423
    %v425 = vlaneseq
    %v426 = vshrl.u32 %v425, 7
    %v427 = vsub.s32 4, %v426
    %v428 = vrot.slane %v407, %v427
    %v530 = vunpack.c.l.b16 %v311
    %v531 = vunpack.c.h.b16 %v311
    %v532 = vunpack.c.l.b16 %v312
    %v533 = vunpack.c.h.b16 %v312
    %v534 = vunpack.c.l.b16 %v313
    %v535 = vunpack.c.l.b16 %v314
    %v536 = vunpack.c.h.b16 %v314
    %v537 = vunpack.c.l.b16 %v315
    %v538 = vunpack.c.h.b16 %v315
    %v539 = vunpack.c.l.b16 %v316
    %v540 = vunpack.c.l.b16 %v317
    %v541 = vunpack.c.h.b16 %v317
    %v542 = vunpack.c.l.b16 %v318
    %v543 = vunpack.c.h.b16 %v318
    %v544 = vunpack.c.l.b16 %v319
    %v545 = vunpack.c.l.b16 %v320
    %v546 = vunpack.c.h.b16 %v320
    %v547 = vunpack.c.l.b16 %v321
    %v548 = vunpack.c.h.b16 %v321
    %v549 = vunpack.c.l.b16 %v322
    %v550 = vunpack.c.l.b16 %v323
    %v551 = vunpack.c.h.b16 %v323
    %v552 = vunpack.c.l.b16 %v324
    %v553 = vunpack.c.h.b16 %v324
    %v554 = vunpack.c.l.b16 %v325
    %v555 = vunpack.c.l.b16 %v326
    %v556 = vunpack.c.h.b16 %v326
    %v557 = vunpack.c.l.b16 %v327
    %v558 = vunpack.c.h.b16 %v327
    %v559 = vunpack.c.l.b16 %v328
    %v560 = vunpack.c.l.b16 %v329
    %v561 = vunpack.c.h.b16 %v329
    %v562 = vunpack.c.l.b16 %v330
    %v563 = vunpack.c.h.b16 %v330
    %v564 = vunpack.c.l.b16 %v331
    %v565 = vunpack.c.l.b16 %v332
    %v566 = vunpack.c.h.b16 %v332
    %v567 = vunpack.c.l.b16 %v333
    %v568 = vunpack.c.h.b16 %v333
    %v569 = vunpack.c.l.b16 %v334
    %v570 = vunpack.c.l.b16 %v335
    %v571 = vunpack.c.h.b16 %v335
    %v572 = vunpack.c.l.b16 %v336
    %v573 = vunpack.c.h.b16 %v336
    %v574 = vunpack.c.l.b16 %v337
    %v575 = vunpack.c.l.b16 %v338
    %v576 = vunpack.c.h.b16 %v338
    %v577 = vunpack.c.l.b16 %v339
    %v578 = vunpack.c.h.b16 %v339
    %v579 = vunpack.c.l.b16 %v340
    %v580 = vunpack.c.l.b16 %v341
    %v581 = vunpack.c.h.b16 %v341
    %v582 = vunpack.c.l.b16 %v342
    %v583 = vunpack.c.h.b16 %v342
    %v584 = vunpack.c.l.b16 %v343
    %v585 = vunpack.c.l.b16 %v344
    %v586 = vunpack.c.h.b16 %v344
    %v587 = vunpack.c.l.b16 %v345
    %v588 = vunpack.c.h.b16 %v345
    %v589 = vunpack.c.l.b16 %v346
    %v590 = vunpack.c.l.b16 %v347
    %v591 = vunpack.c.h.b16 %v347
    %v592 = vunpack.c.l.b16 %v348
    %v593 = vunpack.c.h.b16 %v348
    %v594 = vunpack.c.l.b16 %v349
    %v595 = vunpack.c.l.b16 %v350
    %v596 = vunpack.c.h.b16 %v350
    %v597 = vunpack.c.l.b16 %v351
    %v598 = vunpack.c.h.b16 %v351
    %v599 = vunpack.c.l.b16 %v352
    %v600 = vunpack.c.l.b16 %v353
    %v601 = vunpack.c.h.b16 %v353
    %v602 = vunpack.c.l.b16 %v354
    %v603 = vunpack.c.h.b16 %v354
    %v604 = vunpack.c.l.b16 %v355
    %v605 = vunpack.c.l.b16 %v356
    %v606 = vunpack.c.h.b16 %v356
    %v607 = vunpack.c.l.b16 %v357
    %v608 = vunpack.c.h.b16 %v357
    %v609 = vunpack.c.l.b16 %v358
    %v610 = vunpack.c.l.b16 %v359
    %v611 = vunpack.c.h.b16 %v359
    %v612 = vunpack.c.l.b16 %v360
    %v613 = vunpack.c.h.b16 %v360
    %v614 = vunpack.c.l.b16 %v361
    %v615 = vunpack.c.l.b16 %v362
    %v616 = vunpack.c.h.b16 %v362
    %v617 = vunpack.c.l.b16 %v363
    %v618 = vunpack.c.h.b16 %v363
    %v619 = vunpack.c.l.b16 %v364
    %v620 = vunpack.c.l.b16 %v365
    %v621 = vunpack.c.h.b16 %v365
    %v622 = vunpack.c.l.b16 %v366
    %v623 = vunpack.c.h.b16 %v366
    %v624 = vunpack.c.l.b16 %v367
    %v625 = vunpack.c.l.b16 %v368
    %v626 = vunpack.c.h.b16 %v368
    %v627 = vunpack.c.l.b16 %v369
    %v628 = vunpack.c.h.b16 %v369
    %v629 = vunpack.c.l.b16 %v370
    %v630 = vunpack.c.l.b16 %v371
    %v631 = vunpack.c.h.b16 %v371
    %v632 = vunpack.c.l.b16 %v372
    %v633 = vunpack.c.h.b16 %v372
    %v634 = vunpack.c.l.b16 %v373
    %v635 = vunpack.c.l.b16 %v374
    %v636 = vunpack.c.h.b16 %v374
    %v637 = vunpack.c.l.b16 %v375
    %v638 = vunpack.c.h.b16 %v375
    %v639 = vunpack.c.l.b16 %v376
    %v640 = vunpack.c.l.b16 %v377
    %v641 = vunpack.c.h.b16 %v377
    %v642 = vunpack.c.l.b16 %v378
    %v643 = vunpack.c.h.b16 %v378
    %v644 = vunpack.c.l.b16 %v379
    %v645 = vunpack.c.l.b16 %v380
    %v646 = vunpack.c.h.b16 %v380
    %v647 = vunpack.c.l.b16 %v381
    %v648 = vunpack.c.h.b16 %v381
    %v649 = vunpack.c.l.b16 %v382
    %v650 = vunpack.c.l.b16 %v383
    %v651 = vunpack.c.h.b16 %v383
    %v652 = vunpack.c.l.b16 %v384
    %v653 = vunpack.c.h.b16 %v384
    %v654 = vunpack.c.l.b16 %v385
    %v655 = vunpack.c.l.b16 %v386
    %v656 = vunpack.c.h.b16 %v386
    %v657 = vunpack.c.l.b16 %v387
    %v658 = vunpack.c.h.b16 %v387
    %v659 = vunpack.c.l.b16 %v388
    %v660 = vunpack.c.l.b16 %v389
    %v661 = vunpack.c.h.b16 %v389
    %v662 = vunpack.c.l.b16 %v390
    %v663 = vunpack.c.h.b16 %v390
    %v664 = vunpack.c.l.b16 %v391
    %v665 = vunpack.c.l.b16 %v392
    %v666 = vunpack.c.h.b16 %v392
    %v667 = vunpack.c.l.b16 %v393
    %v668 = vunpack.c.h.b16 %v393
    %v669 = vunpack.c.l.b16 %v394
    %v670 = vunpack.c.l.b16 %v395
    %v671 = vunpack.c.h.b16 %v395
    %v672 = vunpack.c.l.b16 %v396
    %v673 = vunpack.c.h.b16 %v396
    %v674 = vunpack.c.l.b16 %v397
    %v675 = vunpack.c.l.b16 %v398
    %v676 = vunpack.c.h.b16 %v398
    %v677 = vunpack.c.l.b16 %v399
    %v678 = vunpack.c.h.b16 %v399
    %v679 = vunpack.c.l.b16 %v400
    %v680 = vunpack.c.l.b16 %v401
    %v681 = vunpack.c.h.b16 %v401
    %v682 = vunpack.c.l.b16 %v402
    %v683 = vunpack.c.h.b16 %v402
    %v684 = vunpack.c.l.b16 %v403
    %v685 = vunpack.c.l.b16 %v404
    %v686 = vunpack.c.h.b16 %v404
    %v687 = vunpack.c.l.b16 %v405
    %v688 = vunpack.c.h.b16 %v405
    %v689 = vunpack.c.l.b16 %v406
    %v690 = vpack.c.b16 %v535, %v530
    %v691 = vpack.c.b16 %v536, %v531
    %v692 = vpack.c.b16 %v537, %v532
    %v693 = vpack.c.b16 %v538, %v533
    %v694 = vpack.c.b16 %v539, %v534
    %v695 = vpack.c.b16 %v545, %v540
    %v696 = vpack.c.b16 %v546, %v541
    %v697 = vpack.c.b16 %v547, %v542
    %v698 = vpack.c.b16 %v548, %v543
    %v699 = vpack.c.b16 %v549, %v544
    %v700 = vpack.c.b16 %v555, %v550
    %v701 = vpack.c.b16 %v556, %v551
    %v702 = vpack.c.b16 %v557, %v552
    %v703 = vpack.c.b16 %v558, %v553
    %v704 = vpack.c.b16 %v559, %v554
    %v705 = vpack.c.b16 %v565, %v560
    %v706 = vpack.c.b16 %v566, %v561
    %v707 = vpack.c.b16 %v567, %v562
    %v708 = vpack.c.b16 %v568, %v563
    %v709 = vpack.c.b16 %v569, %v564
    %v710 = vpack.c.b16 %v575, %v570
    %v711 = vpack.c.b16 %v576, %v571
    %v712 = vpack.c.b16 %v577, %v572
    %v713 = vpack.c.b16 %v578, %v573
    %v714 = vpack.c.b16 %v579, %v574
    %v715 = vpack.c.b16 %v585, %v580
    %v716 = vpack.c.b16 %v586, %v581
    %v717 = vpack.c.b16 %v587, %v582
    %v718 = vpack.c.b16 %v588, %v583
    %v719 = vpack.c.b16 %v589, %v584
    %v720 = vpack.c.b16 %v595, %v590
    %v721 = vpack.c.b16 %v596, %v591
    %v722 = vpack.c.b16 %v597, %v592
    %v723 = vpack.c.b16 %v598, %v593
    %v724 = vpack.c.b16 %v599, %v594
    %v725 = vpack.c.b16 %v605, %v600
    %v726 = vpack.c.b16 %v606, %v601
    %v727 = vpack.c.b16 %v607, %v602
    %v728 = vpack.c.b16 %v608, %v603
    %v729 = vpack.c.b16 %v609, %v604
    %v730 = vpack.c.b16 %v615, %v610
    %v731 = vpack.c.b16 %v616, %v611
    %v732 = vpack.c.b16 %v617, %v612
    %v733 = vpack.c.b16 %v618, %v613
    %v734 = vpack.c.b16 %v619, %v614
    %v735 = vpack.c.b16 %v625, %v620
    %v736 = vpack.c.b16 %v626, %v621
    %v737 = vpack.c.b16 %v627, %v622
    %v738 = vpack.c.b16 %v628, %v623
    %v739 = vpack.c.b16 %v629, %v624
    %v740 = vpack.c.b16 %v635, %v630
    %v741 = vpack.c.b16 %v636, %v631
    %v742 = vpack.c.b16 %v637, %v632
    %v743 = vpack.c.b16 %v638, %v633
    %v744 = vpack.c.b16 %v639, %v634
    %v745 = vpack.c.b16 %v645, %v640
    %v746 = vpack.c.b16 %v646, %v641
    %v747 = vpack.c.b16 %v647, %v642
    %v748 = vpack.c.b16 %v648, %v643
    %v749 = vpack.c.b16 %v649, %v644
    %v750 = vpack.c.b16 %v655, %v650
    %v751 = vpack.c.b16 %v656, %v651
    %v752 = vpack.c.b16 %v657, %v652
    %v753 = vpack.c.b16 %v658, %v653
    %v754 = vpack.c.b16 %v659, %v654
    %v755 = vpack.c.b16 %v665, %v660
    %v756 = vpack.c.b16 %v666, %v661
    %v757 = vpack.c.b16 %v667, %v662
    %v758 = vpack.c.b16 %v668, %v663
    %v759 = vpack.c.b16 %v669, %v664
    %v760 = vpack.c.b16 %v675, %v670
    %v761 = vpack.c.b16 %v676, %v671
    %v762 = vpack.c.b16 %v677, %v672
    %v763 = vpack.c.b16 %v678, %v673
    %v764 = vpack.c.b16 %v679, %v674
    %v765 = vpack.c.b16 %v685, %v680
    %v766 = vpack.c.b16 %v686, %v681
    %v767 = vpack.c.b16 %v687, %v682
    %v768 = vpack.c.b16 %v688, %v683
    %v769 = vpack.c.b16 %v689, %v684
    %850 = vmatprep.subr.bf16.mxu0 %v726
    %851 = vmatpush1.bf16.msra.mxu0 %v725
    %852 = vmatprep.subr.bf16.mxu0 %v721
    %853 = vmatpush1.bf16.msra.mxu0 %v720
    %854 = vmatprep.subr.bf16.mxu0 %v716
    %855 = vmatpush1.bf16.msra.mxu0 %v715
    %856 = vmatprep.subr.bf16.mxu0 %v711
    %857 = vmatpush1.bf16.msra.mxu0 %v710
    %858 = vmatprep.subr.bf16.mxu0 %v706
    %859 = vmatpush1.bf16.msra.mxu0 %v705
    %860 = vmatprep.subr.bf16.mxu0 %v701
    %861 = vmatpush1.bf16.msra.mxu0 %v700
    %862 = vmatprep.subr.bf16.mxu0 %v696
    %863 = vmatpush1.bf16.msra.mxu0 %v695
    %864 = vmatprep.subr.bf16.mxu0 %v691
    %865 = vmatpush1.bf16.msra.mxu0 %v690
    %866 = vmatprep.subr.bf16.mxu0 %v766
    %867 = vmatpush2.bf16.msra.mxu0 %v765
    %868 = vmatprep.subr.bf16.mxu0 %v761
    %869 = vmatpush2.bf16.msra.mxu0 %v760
    %870 = vmatprep.subr.bf16.mxu0 %v756
    %871 = vmatpush2.bf16.msra.mxu0 %v755
    %872 = vmatprep.subr.bf16.mxu0 %v751
    %873 = vmatpush2.bf16.msra.mxu0 %v750
    %874 = vmatprep.subr.bf16.mxu0 %v746
    %875 = vmatpush2.bf16.msra.mxu0 %v745
    %876 = vmatprep.subr.bf16.mxu0 %v741
    %877 = vmatpush2.bf16.msra.mxu0 %v740
    %878 = vmatprep.subr.bf16.mxu0 %v736
    %879 = vmatpush2.bf16.msra.mxu0 %v735
    %880 = vmatprep.subr.bf16.mxu0 %v731
    %881 = vmatpush2.bf16.msra.mxu0 %v730
    %882 = vmatprep.mubr.bf16.mxu0 %v310
    %883 = vmatmul.mubr.bf16.gmra.mxu0 %v309
    %v884 = vpop.f32.mrf.mxu0
    %v885 = vadd.f32 %v412, %v884
    %v886 = vpop.f32.mrf.mxu0
    %v887 = vadd.f32 %v416, %v886
    %v888 = vpop.f32.mrf.mxu0
    %v889 = vpop.f32.mrf.mxu0
    %890 = vdwg.mxu0
    %891 = vmatprep.subr.bf16.mxu0 %v728
    %892 = vmatpush1.bf16.msra.mxu0 %v727
    %893 = vmatprep.subr.bf16.mxu0 %v723
    %894 = vmatpush1.bf16.msra.mxu0 %v722
    %895 = vmatprep.subr.bf16.mxu0 %v718
    %896 = vmatpush1.bf16.msra.mxu0 %v717
    %897 = vmatprep.subr.bf16.mxu0 %v713
    %898 = vmatpush1.bf16.msra.mxu0 %v712
    %899 = vmatprep.subr.bf16.mxu0 %v708
    %900 = vmatpush1.bf16.msra.mxu0 %v707
    %901 = vmatprep.subr.bf16.mxu0 %v703
    %902 = vmatpush1.bf16.msra.mxu0 %v702
    %903 = vmatprep.subr.bf16.mxu0 %v698
    %904 = vmatpush1.bf16.msra.mxu0 %v697
    %905 = vmatprep.subr.bf16.mxu0 %v693
    %906 = vmatpush1.bf16.msra.mxu0 %v692
    %907 = vmatprep.subr.bf16.mxu0 %v768
    %908 = vmatpush2.bf16.msra.mxu0 %v767
    %909 = vmatprep.subr.bf16.mxu0 %v763
    %910 = vmatpush2.bf16.msra.mxu0 %v762
    %911 = vmatprep.subr.bf16.mxu0 %v758
    %912 = vmatpush2.bf16.msra.mxu0 %v757
    %913 = vmatprep.subr.bf16.mxu0 %v753
    %914 = vmatpush2.bf16.msra.mxu0 %v752
    %915 = vmatprep.subr.bf16.mxu0 %v748
    %916 = vmatpush2.bf16.msra.mxu0 %v747
    %917 = vmatprep.subr.bf16.mxu0 %v743
    %918 = vmatpush2.bf16.msra.mxu0 %v742
    %919 = vmatprep.subr.bf16.mxu0 %v738
    %920 = vmatpush2.bf16.msra.mxu0 %v737
    %921 = vmatprep.subr.bf16.mxu0 %v733
    %922 = vmatpush2.bf16.msra.mxu0 %v732
    %923 = vmatprep.mubr.bf16.mxu0 %v310
    %924 = vmatmul.mubr.bf16.gmra.mxu0 %v309
    %v925 = vpop.f32.mrf.mxu0
    %v926 = vadd.f32 %v420, %v925
    %v927 = vpop.f32.mrf.mxu0
    %v928 = vadd.f32 %v424, %v927
    %v929 = vpop.f32.mrf.mxu0
    %v930 = vpop.f32.mrf.mxu0
    %931 = vdwg.mxu0
    %932 = vmatprep.subr.bf16.mxu0 0
    %933 = vmatpush1.bf16.msra.mxu0 %v729
    %934 = vmatprep.subr.bf16.mxu0 0
    %935 = vmatpush1.bf16.msra.mxu0 %v724
    %936 = vmatprep.subr.bf16.mxu0 0
    %937 = vmatpush1.bf16.msra.mxu0 %v719
    %938 = vmatprep.subr.bf16.mxu0 0
    %939 = vmatpush1.bf16.msra.mxu0 %v714
    %940 = vmatprep.subr.bf16.mxu0 0
    %941 = vmatpush1.bf16.msra.mxu0 %v709
    %942 = vmatprep.subr.bf16.mxu0 0
    %943 = vmatpush1.bf16.msra.mxu0 %v704
    %944 = vmatprep.subr.bf16.mxu0 0
    %945 = vmatpush1.bf16.msra.mxu0 %v699
    %946 = vmatprep.subr.bf16.mxu0 0
    %947 = vmatpush1.bf16.msra.mxu0 %v694
    %948 = vmatprep.subr.bf16.mxu0 0
    %949 = vmatpush2.bf16.msra.mxu0 %v769
    %950 = vmatprep.subr.bf16.mxu0 0
    %951 = vmatpush2.bf16.msra.mxu0 %v764
    %952 = vmatprep.subr.bf16.mxu0 0
    %953 = vmatpush2.bf16.msra.mxu0 %v759
    %954 = vmatprep.subr.bf16.mxu0 0
    %955 = vmatpush2.bf16.msra.mxu0 %v754
    %956 = vmatprep.subr.bf16.mxu0 0
    %957 = vmatpush2.bf16.msra.mxu0 %v749
    %958 = vmatprep.subr.bf16.mxu0 0
    %959 = vmatpush2.bf16.msra.mxu0 %v744
    %960 = vmatprep.subr.bf16.mxu0 0
    %961 = vmatpush2.bf16.msra.mxu0 %v739
    %962 = vmatprep.subr.bf16.mxu0 0
    %963 = vmatpush2.bf16.msra.mxu0 %v734
    %964 = vmatprep.mubr.bf16.mxu0 %v310
    %965 = vmatmul.mubr.bf16.gmra.mxu0 %v309
    %v966 = vpop.f32.mrf.mxu0
    %v967 = vadd.f32 %v428, %v966
    %v968 = vpop.f32.mrf.mxu0
    %v969 = vpop.f32.mrf.mxu0
    %v970 = vpop.f32.mrf.mxu0
    %971 = vdwg.mxu0
    %v972 = vmul.f32 %v885, 0.5
    %v973 = vmul.f32 %v887, 0.5
    %v974 = vmul.f32 %v926, 0.5
    %v975 = vmul.f32 %v928, 0.5
    %v976 = vmul.f32 %v967, 0.5
    %v977 = vtanh.pop %v972
    %v978 = vtanh.pop %v973
    %v979 = vtanh.pop %v974
    %v980 = vtanh.pop %v975
    %v981 = vtanh.pop %v976
    %v982 = vadd.f32 %v977, 1.0
    %v983 = vadd.f32 %v978, 1.0
    %v984 = vadd.f32 %v979, 1.0
    %v985 = vadd.f32 %v980, 1.0
    %v986 = vadd.f32 %v981, 1.0
    %v987 = vmul.f32 %v982, 0.5
    %v988 = vmul.f32 %v983, 0.5
    %v989 = vmul.f32 %v984, 0.5
    %v990 = vmul.f32 %v985, 0.5
    %v991 = vmul.f32 %v986, 0.5
    %v992 = vpack.c.bf16 %v987, %v987
    %v993 = vpack.c.bf16 %v988, %v988
    %v994 = vpack.c.bf16 %v989, %v989
    %v995 = vpack.c.bf16 %v990, %v990
    %v996 = vpack.c.bf16 %v991, %v991
    %v1002 = vunpack.c.l.b16 %v992
    %v1003 = vunpack.c.l.b16 %v993
    %v1004 = vunpack.c.l.b16 %v994
    %v1005 = vunpack.c.l.b16 %v995
    %v1006 = vunpack.c.l.b16 %v996
    %v1007 = vpack.c.b16 %v1003, %v1002
    %v1008 = vpack.c.b16 %v1005, %v1004
    %v1009 = vpack.c.b16 %v1006, %v1006
    %1013 = vst [vmem:[#allocation10] sm:$0xff] %v1007
    %1014 = vst [vmem:[#allocation10 + $0x8] sm:$0xff] %v1008
    %1015 = vst [vmem:[#allocation10 + $0x10] sm:$0xf] %v1009
    // Predicated region
    $region46: #{tpu_custom_call.1} parent=1 // pred_check
      _
    $region47: #{tpu_custom_call.1} parent=1 // pred_check_branch
      %1017 = sbr.rel (0) target = $region49
    $region48: #{tpu_custom_call.1} parent=1 // pred_region
      %s1019 = ssub.s32 320, 320
      %1020 = vsyncadd [#allocation4], %s1019
      %s1022 = sshll.u32 [#allocation10], 4
      %s1023 = int_to_ptr.vmem [resolvable:$true] %s1022
      %1025 = dma.vmem_to_hbm [thread:$0]  %s1023, 320, %s7, [#allocation4]
    $region49: #{tpu_custom_call.1} parent=1 // pred_fallthru
      _
    // Predicated region
    $region50: #{tpu_custom_call.1} parent=1 // pred_check
      _
    $region51: #{tpu_custom_call.1} parent=1 // pred_check_branch
      %1027 = sbr.rel (0) target = $region53
    $region52: #{tpu_custom_call.1} parent=1 // pred_region
      %1028 = dma.done [#allocation4], 320
    $region53: #{tpu_custom_call.1} parent=1 // pred_fallthru
      _
    %1029 = vsyncpa [#allocation3], 1
    %1030 = vsyncpa [#allocation6], 1
    %1031 = vsyncpa [#allocation9], 1
    %1032 = vsyncpa [#allocation4], 1

</llo_original>
